<compile_context>
chip_gen: v6e
topology: v6e:2x2x1
jax: 0.10.0
libtpu: 0.0.40
codegen_flags: <defaults>
</compile_context>

<pallas_src>
import functools
import numpy as np
import jax
import jax.numpy as jnp
from jax.experimental import pallas as pl
from jax.experimental.pallas import tpu as pltpu


def aToBSheduler(step, A, B, gamma=10, max_iter=10000):
    ans = A + (2.0 / (1 + np.exp(-gamma * step * 1.0 / max_iter)) - 1.0) * (B - A)
    return float(ans)


# ---------------------------------------------------------------------------
# Pallas kernel: out = -coeff * g   (the GRL backward, the module's only compute)
# ---------------------------------------------------------------------------
def _neg_scale_kernel(coeff_ref, g_ref, o_ref):
    # coeff lives in SMEM as a (1,) f32 array -> dynamic, no recompile per step.
    c = coeff_ref[0]
    o_ref[...] = (g_ref[...].astype(jnp.float32) * (-c)).astype(o_ref.dtype)


_LANE_CANDS = (1024, 512, 256, 128)   # wide lanes first: unmasked vst, big DMAs
_MAX_BLOCK_BYTES = 4 << 20            # 4 MiB/buffer; in+out double-buffered = 16 MiB
_VMEM_LIMIT_BYTES = 32 << 20          # explicit scoped-VMEM budget (safe on v5e/v6e/v7x)


def _choose_tiling(n, itemsize):
    """Return (R, C, tr) for a lane-dense (R, C) view tiled into (tr, C) blocks,
    or None if no clean tiling exists (caller falls back to plain JAX)."""
    # dtype-aware native sublane tile: 8 for 4-byte, 16 for 2-byte, 32 for 1-byte
    sub = max(8, 32 // max(1, itemsize))

    C = None
    for cand in _LANE_CANDS:
        if n % cand == 0 and (n // cand) % sub == 0:
            C = cand
            break
    if C is None:
        # No pipelinable lane-dense tiling -> skip the kernel (plain JAX fallback).
        return None

    R = n // C
    row_bytes = C * itemsize

    # Largest row tile that is a multiple of `sub`, divides R, and fits the budget.
    cap = (_MAX_BLOCK_BYTES // row_bytes) // sub * sub
    cap = max(sub, min(R, cap))
    tr = sub
    for t in range(cap, sub - 1, -sub):
        if R % t == 0:
            tr = t
            break
    # TODO(synk): on v7x (2 TCs) force >= 2 grid steps via pltpu.get_tpu_info()
    # so the dual-core megacore shares the work; on v5e/v6e the largest tile wins.
    return (R, C, tr)


def pallas_neg_scale(g, coeff):
    """Compute -coeff * g via the Pallas kernel when a lane-dense tiling exists,
    otherwise via plain JAX (still correct, just not hand-tiled)."""
    n = int(g.size)
    if n == 0:
        return g
    coeff_arr = jnp.reshape(jnp.asarray(coeff, jnp.float32), (1,))
    itemsize = jnp.dtype(g.dtype).itemsize
    tiling = _choose_tiling(n, itemsize)
    if tiling is None:
        return (-coeff_arr[0]).astype(g.dtype) * g

    R, C, tr = tiling
    g2d = jnp.reshape(g, (R, C))      # metadata-only reshape of a contiguous array

    y2d = pl.pallas_call(
        _neg_scale_kernel,
        out_shape=jax.ShapeDtypeStruct((R, C), g.dtype),
        grid=(R // tr,),
        in_specs=[
            pl.BlockSpec(memory_space=pltpu.MemorySpace.SMEM),   # coeff scalar
            pl.BlockSpec((tr, C), lambda i: (i, 0)),             # grad tile
        ],
        out_specs=pl.BlockSpec((tr, C), lambda i: (i, 0)),
        compiler_params=pltpu.CompilerParams(
            dimension_semantics=("parallel",),
            vmem_limit_bytes=_VMEM_LIMIT_BYTES,
        ),
        cost_estimate=pl.CostEstimate(
            flops=R * C,
            transcendentals=0,
            bytes_accessed=2 * R * C * itemsize + 4,
        ),
        # TODO(synk): add input_output_aliases={1: 0} + donation at the jit
        # boundary if the caller can give up g, removing the fresh output alloc.
    )(coeff_arr, g2d)
    return jnp.reshape(y2d, g.shape)


# ---------------------------------------------------------------------------
# Gradient reverse layer: identity forward (no kernel launch -> zero HBM traffic),
# backward = -coeff * g via the Pallas kernel.  coeff is a traced (dynamic) value,
# so changing it every step never forces a retrace/recompile under jit.
# ---------------------------------------------------------------------------
@jax.custom_vjp
def gradient_reverse(coeff, x):
    del coeff
    return x


def _grl_fwd(coeff, x):
    return x, coeff


def _grl_bwd(coeff, g):
    # Zero cotangent for coeff (PyTorch returns None), -coeff * g for x.
    return (jnp.zeros_like(jnp.asarray(coeff, jnp.float32)), pallas_neg_scale(g, coeff))


gradient_reverse.defvjp(_grl_fwd, _grl_bwd)


class AdversarialNetwork:
    """JAX/Pallas port of the PyTorch AdversarialNetwork (empty `main` + GRL)."""

    def __init__(self):
        self.scheduler = lambda step: aToBSheduler(step, 0.0, 1.0, gamma=10, max_iter=10000)
        self.global_step = 0.0
        self.coeff = 0.0
        # nn.Sequential() is empty -> no parameters, no further ops.
        # TODO(synk): if layers are ever added to `main`, implement them as fused Pallas ops.

    def __call__(self, x):
        self.coeff = self.scheduler(self.global_step)
        self.global_step += 1.0
        # coeff as a device scalar -> dynamic operand, no recompiles as it changes.
        return gradient_reverse(jnp.float32(self.coeff), x)


if __name__ == "__main__":
    key = jax.random.PRNGKey(0)
    x = jax.random.normal(key, (2, 4, 16, 16), dtype=jnp.float32)  # NCHW like PyTorch

    net = AdversarialNetwork()
    y = jax.block_until_ready(net(x))

    # Forward is identity: exact match, no kernel launched.
    assert y.shape == x.shape and y.dtype == x.dtype
    np.testing.assert_array_equal(np.asarray(y), np.asarray(x))

    # Run the Pallas backward-scale kernel directly once.
    g_direct = jax.block_until_ready(pallas_neg_scale(jnp.ones_like(x), jnp.float32(0.5)))
    np.testing.assert_allclose(np.asarray(g_direct), -0.5 * np.ones(x.shape, np.float32), rtol=1e-6)

    # Backward through the custom_vjp is -coeff * g (Pallas kernel on the hot path).
    coeff = jnp.float32(0.5)
    g = jax.grad(lambda z: jnp.sum(gradient_reverse(coeff, z)))(x)
    g = jax.block_until_ready(g)
    np.testing.assert_allclose(np.asarray(g), -0.5 * np.ones(x.shape, np.float32), rtol=1e-6)

    print("KERNEL_OK")
</pallas_src>

<mosaic_0001>
module attributes {stable_mosaic.version = 11 : i64} {
  func.func @_neg_scale_kernel(%arg0: i32, %arg1: memref<1xf32, #tpu.memory_space<smem>>, %arg2: memref<8x256xf32, #tpu.memory_space<vmem>>, %arg3: memref<8x256xf32, #tpu.memory_space<vmem>>) attributes {dimension_semantics = [#tpu.dimension_semantics<parallel>], iteration_bounds = array<i64: 1>, scalar_prefetch = 0 : i64, scratch_operands = 0 : i64, tpu.core_type = #tpu.core_type<tc>, window_params = [{transform_indices = @transform_0, window_bounds = array<i64: 1>}, {transform_indices = @transform_1, window_bounds = array<i64: 8, 256>}, {transform_indices = @transform_2, window_bounds = array<i64: 8, 256>}]} {
    %c0 = arith.constant 0 : index
    %0 = memref.load %arg1[%c0] : memref<1xf32, #tpu.memory_space<smem>>
    %c0_0 = arith.constant 0 : index
    %c0_1 = arith.constant 0 : index
    %1 = vector.load %arg2[%c0_0, %c0_1] : memref<8x256xf32, #tpu.memory_space<vmem>>, vector<8x256xf32>
    %cst = arith.constant 0.000000e+00 : f32
    %2 = arith.subf %cst, %0 : f32
    %3 = vector.broadcast %2 : f32 to vector<8x256xf32>
    %4 = arith.mulf %1, %3 : vector<8x256xf32>
    %c0_2 = arith.constant 0 : index
    %c0_3 = arith.constant 0 : index
    %5 = vector.load %arg3[%c0_2, %c0_3] : memref<8x256xf32, #tpu.memory_space<vmem>>, vector<8x256xf32>
    tpu.vector_store %arg3[%c0_2, %c0_3], %4 {strides = array<i32>} : memref<8x256xf32, #tpu.memory_space<vmem>>, vector<8x256xf32>,
    return
  }
  func.func @transform_0(%arg0: i32) -> i32 {
    %c0_i32 = arith.constant 0 : i32
    %c0_i32_0 = arith.constant 0 : i32
    return %c0_i32 : i32
  }
  func.func @transform_1(%arg0: i32) -> (i32, i32) {
    %c0_i32 = arith.constant 0 : i32
    %c0_i32_0 = arith.constant 0 : i32
    return %arg0, %c0_i32 : i32, i32
  }
  func.func @transform_2(%arg0: i32) -> (i32, i32) {
    %c0_i32 = arith.constant 0 : i32
    %c0_i32_0 = arith.constant 0 : i32
    return %arg0, %c0_i32 : i32, i32
  }
}

</mosaic_0001>

<llo_original>
// kernel: tpu_custom_call.1
$region0: #{tpu_custom_call.1}
  #allocation0 [shape = 'u32[]', space=smem, size = 0x4, offset = 0x4, fixed_abs, tag = 'smem constant byte address 0x4 - core index']
  #allocation1 [shape = 'u32[144,128]{1,0:T(1,128)}', space=vmem, size = 0x12000, scoped, tag = 'internal scratch']
  #allocation2 [shape = 'f32[1]{0:T(128)S(6)}', space=smem, size = 0x200, scoped, tag = 'scoped memory for tpu_custom_call.1']
  %s0 = inlined_call_operand.<no memory space> [shape: f32[1], index: 0, kind: input, shape index: {}]
  %s1 = inlined_call_operand.hbm [shape: f32[8,256], index: 1, kind: input, shape index: {}]
  %s2 = inlined_call_operand.hbm [shape: f32[8,256], index: 2, kind: output, shape index: {}]
  %s3 = sld [smem:[#allocation0]]
  $region22: #{tpu_custom_call.1} parent=0
    _
  %s5 = ssub.s32 1, %s3
  %s6 = scalar_select 0, %s5, %s3
  %7 = sst [smem:[#allocation2]] %s0
  $region1: #{tpu_custom_call.1} parent=0
    #allocation3 [shape = 'u8[8192]{0}', space=vmem, size = 0x2000, scoped, tag = 'input window, operand 1, single buffered']
    #allocation4 [shape = 's32[1]{0}', space=sflag, size = 0x4, scoped, tag = 'scoped memory for tpu_custom_call.1']
    #allocation5 [shape = 's32[1]{0}', space=sflag, size = 0x4, scoped, tag = 'scoped memory for tpu_custom_call.1']
    #allocation6 [shape = 'u8[8192]{0}', space=vmem, size = 0x2000, scoped, tag = 'output window, operand 0, single buffered']
    %8 = vsyncpa [#allocation4], 0
    %9 = vsyncpa [#allocation5], 0
    // Predicated region
    $region2: #{tpu_custom_call.1} parent=1 // pred_check
      _
    $region3: #{tpu_custom_call.1} parent=1 // pred_check_branch
      %11 = sbr.rel (0) target = $region5
    $region4: #{tpu_custom_call.1} parent=1 // pred_region
      _
    $region5: #{tpu_custom_call.1} parent=1 // pred_fallthru
      _
    // Predicated region
    $region6: #{tpu_custom_call.1} parent=1 // pred_check
      _
    $region7: #{tpu_custom_call.1} parent=1 // pred_check_branch
      %13 = sbr.rel (0) target = $region9
    $region8: #{tpu_custom_call.1} parent=1 // pred_region
      %s15 = ssub.s32 256, 256
      %16 = vsyncadd [#allocation4], %s15
      %s18 = sshll.u32 [#allocation3], 4
      %s19 = int_to_ptr.vmem [resolvable:$true] %s18
      %21 = dma.hbm_to_vmem [thread:$0]  %s1, 256, %s19, [#allocation4]
    $region9: #{tpu_custom_call.1} parent=1 // pred_fallthru
      _
    // Predicated region
    $region10: #{tpu_custom_call.1} parent=1 // pred_check
      _
    $region11: #{tpu_custom_call.1} parent=1 // pred_check_branch
      %23 = sbr.rel (0) target = $region13
    $region12: #{tpu_custom_call.1} parent=1 // pred_region
      %24 = dma.done [#allocation4], 256
    $region13: #{tpu_custom_call.1} parent=1 // pred_fallthru
      _
    %s25 = sld [smem:[#allocation2]]
    %v26 = vld [vmem:[#allocation3] sm:$0xff]
    %v27 = vld [vmem:[#allocation3 + $0x8] sm:$0xff]
    %s28 = ssub.f32 0.0, %s25
    %v29 = vstv %s28
    %v30 = vmul.f32 %v26, %v29
    %v31 = vmul.f32 %v27, %v29
    %32 = vst [vmem:[#allocation6] sm:$0xff] %v30
    %33 = vst [vmem:[#allocation6 + $0x8] sm:$0xff] %v31
    // Predicated region
    $region14: #{tpu_custom_call.1} parent=1 // pred_check
      _
    $region15: #{tpu_custom_call.1} parent=1 // pred_check_branch
      %35 = sbr.rel (0) target = $region17
    $region16: #{tpu_custom_call.1} parent=1 // pred_region
      %s37 = ssub.s32 256, 256
      %38 = vsyncadd [#allocation5], %s37
      %s40 = sshll.u32 [#allocation6], 4
      %s41 = int_to_ptr.vmem [resolvable:$true] %s40
      %43 = dma.vmem_to_hbm [thread:$0]  %s41, 256, %s2, [#allocation5]
    $region17: #{tpu_custom_call.1} parent=1 // pred_fallthru
      _
    // Predicated region
    $region18: #{tpu_custom_call.1} parent=1 // pred_check
      _
    $region19: #{tpu_custom_call.1} parent=1 // pred_check_branch
      %45 = sbr.rel (0) target = $region21
    $region20: #{tpu_custom_call.1} parent=1 // pred_region
      %46 = dma.done [#allocation5], 256
    $region21: #{tpu_custom_call.1} parent=1 // pred_fallthru
      _
    %47 = vsyncpa [#allocation4], 1
    %48 = vsyncpa [#allocation5], 1

</llo_original>
